<compile_context>
chip_gen: v7x
topology: tpu7x:2x2x1
jax: 0.10.0
libtpu: 0.0.40
codegen_flags: <defaults>
</compile_context>

<pallas_src>
import functools
import math

import jax
import jax.numpy as jnp
from jax.experimental import pallas as pl
from jax.experimental.pallas import tpu as pltpu

DEFAULT_LIF_ALPHA = 0.9
DEFAULT_LIF_ADAPTIVE_ALPHA_MEAN = 1.0
DEFAULT_LIF_ADAPTIVE_ALPHA_STD = 1.0
THETA = 1.0

_MIB = 1024 * 1024


def _round_up(n, m):
    return ((n + m - 1) // m) * m


def _pad_to(a, shape):
    pads = [(0, s - d) for d, s in zip(a.shape, shape)]
    if any(p[1] for p in pads):
        a = jnp.pad(a, pads)
    return a


def _tpu_vmem_budget():
    """Generation-aware VMEM budget (bytes) + v7x flag (2 TCs, 64 MiB VMEM)."""
    try:
        cap = int(getattr(pltpu.get_tpu_info(), "vmem_capacity_bytes"))
    except Exception:
        cap = 0
    if cap >= 100 * _MIB:                  # v5e / v6e class (128 MiB physical)
        return 96 * _MIB, False
    if 48 * _MIB <= cap < 100 * _MIB:      # v7x class (64 MiB physical, 2 TCs)
        return 44 * _MIB, True
    return 40 * _MIB, False                # unknown: conservative, generic


_VMEM_LIMIT, _IS_V7X = _tpu_vmem_budget()


# ----------------------------------------------------------------------------
# Single-timestep kernels (LIFCell.forward).
# ----------------------------------------------------------------------------
def _lif_cell_kernel(x_ref, w_ref, alpha_ref, oma_ref, u_ref, z_ref, u_out_ref):
    # Full-K weight panel resident: one MXU matmul, fused LIF elementwise tail.
    in_sum = jnp.dot(x_ref[...], w_ref[...], preferred_element_type=jnp.float32)
    u = u_ref[...] * alpha_ref[...] + in_sum * oma_ref[...]
    # TODO(synk): confirm StepLinearGrad behaviour at exactly u == theta
    # (strict '>' used here, matching Heaviside(0)=0 convention).
    z = (u - (THETA / THETA) > 0.0).astype(jnp.float32)
    u_out_ref[...] = u - z * THETA
    z_ref[...] = z.astype(z_ref.dtype)


def _lif_cell_kernel_ktiled(x_ref, w_ref, alpha_ref, oma_ref, u_ref,
                            z_ref, u_out_ref, acc_ref):
    # Fallback for very large input_size: K-tiled grid with f32 accumulator.
    k = pl.program_id(2)

    @pl.when(k == 0)
    def _():
        acc_ref[...] = jnp.zeros_like(acc_ref)

    acc_ref[...] += jnp.dot(x_ref[...], w_ref[...],
                            preferred_element_type=jnp.float32)

    @pl.when(k == pl.num_programs(2) - 1)
    def _():
        u = u_ref[...] * alpha_ref[...] + acc_ref[...] * oma_ref[...]
        z = (u - (THETA / THETA) > 0.0).astype(jnp.float32)
        u_out_ref[...] = u - z * THETA
        z_ref[...] = z.astype(z_ref.dtype)


@functools.partial(jax.jit, static_argnames=("n_out",))
def lif_cell_forward(x, w_pad, alpha_pad, oma_pad, u, *, n_out):
    """x: (B, I)  w_pad: (K_pad, N_pad) bf16  alpha/oma: (1, N_pad)  u: (B, N).
    Returns (z  (B, n_out) bf16, u_new (B, n_out) f32)."""
    B, I = x.shape
    K_pad, N_pad = w_pad.shape
    assert K_pad == _round_up(I, 128) and N_pad % 128 == 0

    tm = min(128, _round_up(B, 8))
    B_pad = _round_up(B, tm)
    budget = int(0.8 * _VMEM_LIMIT)

    # Largest lane-dense tn such that a full-K weight panel (double-buffered)
    # fits VMEM -> no K grid axis, no accumulator scratch.
    tn = None
    for cand in (512, 256, 128):
        if N_pad % cand:
            continue
        need = (2 * 2 * (tm * K_pad + K_pad * cand)      # x + w, bf16, dbl-buf
                + 2 * (2 + 4 + 4) * tm * cand)           # z(bf16) + u in/out(f32)
        if need <= budget:
            tn = cand
            break

    x_p = _pad_to(x.astype(jnp.bfloat16), (B_pad, K_pad))
    u_p = _pad_to(u.astype(jnp.float32), (B_pad, N_pad))
    out_shape = (jax.ShapeDtypeStruct((B_pad, N_pad), jnp.bfloat16),
                 jax.ShapeDtypeStruct((B_pad, N_pad), jnp.float32))

    if tn is not None:
        # v7x: make sure both TensorCores get at least one parallel tile.
        if _IS_V7X and (B_pad // tm) * (N_pad // tn) < 2:
            if tn > 128 and N_pad % (tn // 2) == 0:
                tn //= 2
            elif tm > 8:
                tm //= 2
        grid = (B_pad // tm, N_pad // tn)
        z_p, u_new_p = pl.pallas_call(
            _lif_cell_kernel,
            out_shape=out_shape,
            grid_spec=pltpu.PrefetchScalarGridSpec(
                num_scalar_prefetch=0,
                grid=grid,
                in_specs=[
                    pl.BlockSpec((tm, K_pad), lambda i, j: (i, 0)),   # x
                    pl.BlockSpec((K_pad, tn), lambda i, j: (0, j)),   # W (full K)
                    pl.BlockSpec((1, tn), lambda i, j: (0, j)),       # alpha
                    pl.BlockSpec((1, tn), lambda i, j: (0, j)),       # 1 - alpha
                    pl.BlockSpec((tm, tn), lambda i, j: (i, j)),      # u (state)
                ],
                out_specs=(pl.BlockSpec((tm, tn), lambda i, j: (i, j)),
                           pl.BlockSpec((tm, tn), lambda i, j: (i, j))),
            ),
            compiler_params=pltpu.CompilerParams(
                dimension_semantics=("parallel", "parallel"),
                vmem_limit_bytes=_VMEM_LIMIT,
            ),
            input_output_aliases={4: 1},        # u updated in place
        )(x_p, w_pad, alpha_pad, oma_pad, u_p)
    else:
        tn = max(c for c in (512, 256, 128) if N_pad % c == 0)
        tk = max(c for c in (512, 256, 128) if K_pad % c == 0)
        grid = (B_pad // tm, N_pad // tn, K_pad // tk)
        z_p, u_new_p = pl.pallas_call(
            _lif_cell_kernel_ktiled,
            out_shape=out_shape,
            grid_spec=pltpu.PrefetchScalarGridSpec(
                num_scalar_prefetch=0,
                grid=grid,
                in_specs=[
                    pl.BlockSpec((tm, tk), lambda i, j, k: (i, k)),
                    pl.BlockSpec((tk, tn), lambda i, j, k: (k, j)),
                    pl.BlockSpec((1, tn), lambda i, j, k: (0, j)),
                    pl.BlockSpec((1, tn), lambda i, j, k: (0, j)),
                    pl.BlockSpec((tm, tn), lambda i, j, k: (i, j)),
                ],
                out_specs=(pl.BlockSpec((tm, tn), lambda i, j, k: (i, j)),
                           pl.BlockSpec((tm, tn), lambda i, j, k: (i, j))),
                scratch_shapes=[pltpu.VMEM((tm, tn), jnp.float32)],
            ),
            compiler_params=pltpu.CompilerParams(
                dimension_semantics=("parallel", "parallel", "arbitrary"),
                vmem_limit_bytes=_VMEM_LIMIT,
            ),
            input_output_aliases={4: 1},
        )(x_p, w_pad, alpha_pad, oma_pad, u_p)

    return z_p[:B, :n_out], u_new_p[:B, :n_out]


# ----------------------------------------------------------------------------
# Fused-sequence kernel: time-blocked recurrent loop.  Grid = (N tiles, time
# blocks); weight panel and membrane potential stay resident across time.
# ----------------------------------------------------------------------------
def _lif_seq_kernel(x_ref, w_ref, alpha_ref, oma_ref, u0_ref,
                    z_ref, u_out_ref, u_sc, *, t_valid):
    tb = pl.program_id(1)
    bp = u0_ref.shape[0]                     # padded batch rows
    tt = x_ref.shape[0] // bp                # timesteps in this block

    @pl.when(tb == 0)
    def _():
        u_sc[...] = u0_ref[...]

    # One MXU matmul for the whole (tt * B) time block (the matmul has no
    # temporal recurrence, only the elementwise LIF update does).
    in_sum = jnp.dot(x_ref[...], w_ref[...], preferred_element_type=jnp.float32)

    alpha = alpha_ref[...]
    oma = oma_ref[...]
    u = u_sc[...]
    # Static (fully unrolled) recurrent tail: static, tile-aligned slices/stores.
    for t in range(tt):
        u_new = u * alpha + in_sum[t * bp:(t + 1) * bp, :] * oma
        z = (u_new - (THETA / THETA) > 0.0).astype(jnp.float32)
        u_new = u_new - z * THETA
        z_ref[t * bp:(t + 1) * bp, :] = z.astype(z_ref.dtype)
        if t_valid is None:
            u = u_new
        else:
            # Padded timesteps must not advance the membrane state.
            u = jnp.where(tb * tt + t < t_valid, u_new, u)
    u_sc[...] = u

    @pl.when(tb == pl.num_programs(1) - 1)
    def _():
        u_out_ref[...] = u_sc[...]


@functools.partial(jax.jit, static_argnames=("n_out",))
def lif_sequence_forward(x_seq, w_pad, alpha_pad, oma_pad, u0, *, n_out):
    """x_seq: (T, B, I)  w_pad: (K_pad, N_pad) bf16  u0: (B, N)
       -> (z_seq (T, B, n_out) bf16, u_final (B, n_out) f32)."""
    T, B, I = x_seq.shape
    K_pad, N_pad = w_pad.shape
    assert K_pad == _round_up(I, 128) and N_pad % 128 == 0

    B_pad = _round_up(B, 8)
    budget = int(0.85 * _VMEM_LIMIT)
    w_bufs = 1 if _IS_V7X else 2             # single-buffer weight panel on v7x

    tn = 128
    for cand in (512, 256, 128):
        if N_pad % cand == 0 and w_bufs * K_pad * cand * 2 <= budget // 2:
            tn = cand
            break
    if _IS_V7X and (N_pad // tn) < 2 and tn > 128 and N_pad % (tn // 2) == 0:
        tn //= 2                             # feed both TensorCores

    # Time block Tt: amortize grid-step overhead, raise MXU M-occupancy.
    def vmem_need(tt_):
        return (w_bufs * K_pad * tn * 2
                + 2 * tt_ * B_pad * K_pad * 2      # x slab (bf16, dbl-buf)
                + 2 * tt_ * B_pad * tn * 2         # z slab (bf16, dbl-buf)
                + 5 * B_pad * tn * 4 + 4 * tn * 4)
    tt = max(1, min(32, T))
    while tt > 1 and vmem_need(tt) > budget:
        tt //= 2
    T_pad = _round_up(T, tt)
    # TODO(synk): tile batch / K inside the time loop for very large B or
    # input_size (currently the full padded batch and K live in one block).

    # Host-side row-major merge of (time, batch) -> rows; free reshape.
    x_p = _pad_to(x_seq.astype(jnp.bfloat16), (T_pad, B_pad, K_pad))
    x2 = x_p.reshape(T_pad * B_pad, K_pad)
    u_p = _pad_to(u0.astype(jnp.float32), (B_pad, N_pad))

    grid = (N_pad // tn, T_pad // tt)

    if _IS_V7X:
        w_spec = pl.BlockSpec((K_pad, tn), lambda j, t: (0, j),
                              pipeline_mode=pl.Buffered(1))
    else:
        w_spec = pl.BlockSpec((K_pad, tn), lambda j, t: (0, j))

    kernel = functools.partial(_lif_seq_kernel,
                               t_valid=None if T_pad == T else T)

    z2, u_fin = pl.pallas_call(
        kernel,
        out_shape=(jax.ShapeDtypeStruct((T_pad * B_pad, N_pad), jnp.bfloat16),
                   jax.ShapeDtypeStruct((B_pad, N_pad), jnp.float32)),
        grid_spec=pltpu.PrefetchScalarGridSpec(
            num_scalar_prefetch=0,
            grid=grid,
            in_specs=[
                pl.BlockSpec((tt * B_pad, K_pad), lambda j, t: (t, 0)),  # x slab
                w_spec,                                                  # W
                pl.BlockSpec((1, tn), lambda j, t: (0, j)),              # alpha
                pl.BlockSpec((1, tn), lambda j, t: (0, j)),              # 1-alpha
                pl.BlockSpec((B_pad, tn), lambda j, t: (0, j)),          # u0
            ],
            out_specs=(
                pl.BlockSpec((tt * B_pad, tn), lambda j, t: (t, j)),     # z slab
                pl.BlockSpec((B_pad, tn), lambda j, t: (0, j)),          # u_T
            ),
            scratch_shapes=[pltpu.VMEM((B_pad, tn), jnp.float32)],
        ),
        compiler_params=pltpu.CompilerParams(
            dimension_semantics=("parallel", "arbitrary"),
            vmem_limit_bytes=_VMEM_LIMIT,
        ),
        input_output_aliases={4: 1},          # u0 -> u_final in place
    )(x2, w_pad, alpha_pad, oma_pad, u_p)

    z_seq = z2.reshape(T_pad, B_pad, N_pad)
    return z_seq[:T, :B, :n_out], u_fin[:B, :n_out]


# ----------------------------------------------------------------------------
# Module-level wrapper (mirrors torch LIFCell, bias=False).
# ----------------------------------------------------------------------------
class LIFCellPallas:
    def __init__(self, input_size, layer_size, alpha=DEFAULT_LIF_ALPHA,
                 adaptive_alpha=False,
                 adaptive_alpha_mean=DEFAULT_LIF_ADAPTIVE_ALPHA_MEAN,
                 adaptive_alpha_std=DEFAULT_LIF_ADAPTIVE_ALPHA_STD,
                 key=None):
        self.input_size = input_size
        self.layer_size = layer_size
        self.adaptive_alpha = adaptive_alpha
        if key is None:
            key = jax.random.PRNGKey(0)
        k_w, k_a = jax.random.split(key)
        # torch.nn.Linear weight shape is (out, in); xavier_uniform_ bound.
        bound = math.sqrt(6.0 / (input_size + layer_size))
        self.weight = jax.random.uniform(k_w, (layer_size, input_size),
                                         minval=-bound, maxval=bound,
                                         dtype=jnp.float32)
        self._k_pad = _round_up(input_size, 128)
        self._n_pad = _round_up(layer_size, 128)
        # One-time weight cast + pad: bf16, MXU/lane aligned (review item #2).
        self.w_pad = _pad_to(self.weight.T.astype(jnp.bfloat16),
                             (self._k_pad, self._n_pad))
        # TODO(synk): int8 (v5e/v6e) / fp8 (v7x) quantized-weight path not wired.
        if adaptive_alpha:
            self.alpha_param = (adaptive_alpha_mean + adaptive_alpha_std *
                                jax.random.normal(k_a, (layer_size,), jnp.float32))
            self._alpha_pad = self._oma_pad = None
        else:
            self.alpha_param = alpha * jnp.ones((layer_size,), jnp.float32)
            a2 = self.alpha_param.reshape(1, -1)
            self._alpha_pad = _pad_to(a2, (1, self._n_pad))
            self._oma_pad = _pad_to(1.0 - a2, (1, self._n_pad))
        # TODO(synk): optionally fold (1 - alpha) into W at init when alpha is frozen.

    @property
    def alpha(self):
        if self.adaptive_alpha:
            return jax.nn.sigmoid(2.0 * self.alpha_param)
        return self.alpha_param

    def _alpha_oma_padded(self):
        if self.adaptive_alpha:
            a2 = jax.nn.sigmoid(2.0 * self.alpha_param).reshape(1, -1)
            return (_pad_to(a2, (1, self._n_pad)),
                    _pad_to(1.0 - a2, (1, self._n_pad)))
        return self._alpha_pad, self._oma_pad

    def __call__(self, x, state):
        z, u = state
        ap, op = self._alpha_oma_padded()
        return lif_cell_forward(x, self.w_pad, ap, op, u, n_out=self.layer_size)

    def forward_sequence(self, x_seq, u0):
        ap, op = self._alpha_oma_padded()
        return lif_sequence_forward(x_seq, self.w_pad, ap, op, u0,
                                    n_out=self.layer_size)


if __name__ == "__main__":
    key = jax.random.PRNGKey(0)
    k_w, k_x, k_u, k_seq = jax.random.split(key, 4)

    batch, input_size, layer_size, seq_len = 2, 32, 32, 8
    cell = LIFCellPallas(input_size, layer_size, key=k_w)

    x = jax.random.normal(k_x, (batch, input_size), dtype=jnp.float32)
    u0 = jax.random.normal(k_u, (batch, layer_size), dtype=jnp.float32)
    z0 = jnp.zeros((batch, layer_size), dtype=jnp.float32)

    # ---- single-step forward (matches LIFCell.forward) ----
    z, u = cell(x, (z0, u0))
    jax.block_until_ready((z, u))

    w_t = cell.weight.T                       # (in, out) f32
    a = cell.alpha[None, :]
    in_sum = jnp.dot(x.astype(jnp.bfloat16), w_t.astype(jnp.bfloat16),
                     preferred_element_type=jnp.float32)
    pre = u0 * a + in_sum * (1.0 - a)
    z_ref = (pre - 1.0 > 0.0).astype(jnp.float32)
    u_ref = pre - z_ref
    safe = jnp.abs(pre - 1.0) > 1e-4          # ignore razor-edge threshold cases
    assert bool(jnp.all((z.astype(jnp.float32) == z_ref) | ~safe)), "spike mismatch"
    assert bool(jnp.all((jnp.abs(u - u_ref) < 1e-3) | ~safe)), "membrane mismatch"

    # ---- fused-sequence forward vs lax.scan reference ----
    x_seq = jax.random.normal(k_seq, (seq_len, batch, input_size), jnp.float32)
    z_seq, u_fin = cell.forward_sequence(x_seq, u0)
    jax.block_until_ready((z_seq, u_fin))

    def step(u_c, x_t):
        s = jnp.dot(x_t.astype(jnp.bfloat16), w_t.astype(jnp.bfloat16),
                    preferred_element_type=jnp.float32)
        p = u_c * a + s * (1.0 - a)
        zz = (p - 1.0 > 0.0).astype(jnp.float32)
        return p - zz, (zz, p)

    u_fin_ref, (z_seq_ref, pre_seq) = jax.lax.scan(step, u0, x_seq)
    safe_seq = jnp.abs(pre_seq - 1.0) > 1e-4
    valid = jnp.cumprod(safe_seq.astype(jnp.int32), axis=0) > 0
    assert bool(jnp.all((z_seq.astype(jnp.float32) == z_seq_ref) | ~valid)), \
        "seq spike mismatch"
    assert bool(jnp.all((jnp.abs(u_fin - u_fin_ref) < 1e-3) | ~valid[-1])), \
        "seq membrane mismatch"

    print("KERNEL_OK")
</pallas_src>

<mosaic_0001>
module attributes {stable_mosaic.version = 11 : i64} {
  func.func @_lif_cell_kernel(%arg0: i32, %arg1: i32, %arg2: memref<8x128xbf16, #tpu.memory_space<vmem>>, %arg3: memref<128x128xbf16, #tpu.memory_space<vmem>>, %arg4: memref<1x128xf32, #tpu.memory_space<vmem>>, %arg5: memref<1x128xf32, #tpu.memory_space<vmem>>, %arg6: memref<8x128xf32, #tpu.memory_space<vmem>>, %arg7: memref<8x128xbf16, #tpu.memory_space<vmem>>, %arg8: memref<8x128xf32, #tpu.memory_space<vmem>>) attributes {dimension_semantics = [#tpu.dimension_semantics<parallel>, #tpu.dimension_semantics<parallel>], iteration_bounds = array<i64: 1, 1>, scalar_prefetch = 0 : i64, scratch_operands = 0 : i64, tpu.core_type = #tpu.core_type<tc>, window_params = [{transform_indices = @transform_0, window_bounds = array<i64: 8, 128>}, {transform_indices = @transform_1, window_bounds = array<i64: 128, 128>}, {transform_indices = @transform_2, window_bounds = array<i64: 1, 128>}, {transform_indices = @transform_3, window_bounds = array<i64: 1, 128>}, {transform_indices = @transform_4, window_bounds = array<i64: 8, 128>}, {transform_indices = @transform_5, window_bounds = array<i64: 8, 128>}, {transform_indices = @transform_6, window_bounds = array<i64: 8, 128>}]} {
    %c0 = arith.constant 0 : index
    %c0_0 = arith.constant 0 : index
    %0 = vector.load %arg2[%c0, %c0_0] : memref<8x128xbf16, #tpu.memory_space<vmem>>, vector<8x128xbf16>
    %c0_1 = arith.constant 0 : index
    %c0_2 = arith.constant 0 : index
    %1 = vector.load %arg3[%c0_1, %c0_2] : memref<128x128xbf16, #tpu.memory_space<vmem>>, vector<128x128xbf16>
    %cst = arith.constant dense<0.000000e+00> : vector<8x128xf32>
    %2 = tpu.matmul %0, %1, %cst {dimension_numbers = #tpu.dot_dimension_numbers<[1], [0], [0], [1], [0, 0, 1, 1], [], []>} : vector<8x128xbf16>, vector<128x128xbf16>, vector<8x128xf32> -> vector<8x128xf32>
    %c0_3 = arith.constant 0 : index
    %c0_4 = arith.constant 0 : index
    %3 = vector.load %arg6[%c0_3, %c0_4] : memref<8x128xf32, #tpu.memory_space<vmem>>, vector<8x128xf32>
    %c0_5 = arith.constant 0 : index
    %c0_6 = arith.constant 0 : index
    %4 = vector.load %arg4[%c0_5, %c0_6] : memref<1x128xf32, #tpu.memory_space<vmem>>, vector<1x128xf32>
    %5 = vector.broadcast %4 : vector<1x128xf32> to vector<8x128xf32>
    %6 = arith.mulf %3, %5 : vector<8x128xf32>
    %c0_7 = arith.constant 0 : index
    %c0_8 = arith.constant 0 : index
    %7 = vector.load %arg5[%c0_7, %c0_8] : memref<1x128xf32, #tpu.memory_space<vmem>>, vector<1x128xf32>
    %8 = vector.broadcast %7 : vector<1x128xf32> to vector<8x128xf32>
    %9 = arith.mulf %2, %8 : vector<8x128xf32>
    %10 = arith.addf %6, %9 : vector<8x128xf32>
    %cst_9 = arith.constant 1.000000e+00 : f32
    %11 = vector.broadcast %cst_9 : f32 to vector<8x128xf32>
    %12 = arith.subf %10, %11 : vector<8x128xf32>
    %cst_10 = arith.constant 0.000000e+00 : f32
    %13 = vector.broadcast %cst_10 : f32 to vector<8x128xf32>
    %14 = arith.cmpf ogt, %12, %13 : vector<8x128xf32>
    %15 = arith.extui %14 : vector<8x128xi1> to vector<8x128xi32>
    %16 = arith.sitofp %15 : vector<8x128xi32> to vector<8x128xf32>
    %cst_11 = arith.constant 1.000000e+00 : f32
    %17 = vector.broadcast %cst_11 : f32 to vector<8x128xf32>
    %18 = arith.mulf %16, %17 : vector<8x128xf32>
    %19 = arith.subf %10, %18 : vector<8x128xf32>
    %c0_12 = arith.constant 0 : index
    %c0_13 = arith.constant 0 : index
    %20 = vector.load %arg8[%c0_12, %c0_13] : memref<8x128xf32, #tpu.memory_space<vmem>>, vector<8x128xf32>
    tpu.vector_store %arg8[%c0_12, %c0_13], %19 {strides = array<i32>} : memref<8x128xf32, #tpu.memory_space<vmem>>, vector<8x128xf32>,
    %21 = arith.truncf %16 : vector<8x128xf32> to vector<8x128xbf16>
    %c0_14 = arith.constant 0 : index
    %c0_15 = arith.constant 0 : index
    %22 = vector.load %arg7[%c0_14, %c0_15] : memref<8x128xbf16, #tpu.memory_space<vmem>>, vector<8x128xbf16>
    tpu.vector_store %arg7[%c0_14, %c0_15], %21 {strides = array<i32>} : memref<8x128xbf16, #tpu.memory_space<vmem>>, vector<8x128xbf16>,
    return
  }
  func.func @transform_0(%arg0: i32, %arg1: i32) -> (i32, i32) {
    %c0_i32 = arith.constant 0 : i32
    %c0_i32_0 = arith.constant 0 : i32
    return %arg0, %c0_i32 : i32, i32
  }
  func.func @transform_1(%arg0: i32, %arg1: i32) -> (i32, i32) {
    %c0_i32 = arith.constant 0 : i32
    %c0_i32_0 = arith.constant 0 : i32
    return %c0_i32, %arg1 : i32, i32
  }
  func.func @transform_2(%arg0: i32, %arg1: i32) -> (i32, i32) {
    %c0_i32 = arith.constant 0 : i32
    %c0_i32_0 = arith.constant 0 : i32
    return %c0_i32, %arg1 : i32, i32
  }
  func.func @transform_3(%arg0: i32, %arg1: i32) -> (i32, i32) {
    %c0_i32 = arith.constant 0 : i32
    %c0_i32_0 = arith.constant 0 : i32
    return %c0_i32, %arg1 : i32, i32
  }
  func.func @transform_4(%arg0: i32, %arg1: i32) -> (i32, i32) {
    %c0_i32 = arith.constant 0 : i32
    return %arg0, %arg1 : i32, i32
  }
  func.func @transform_5(%arg0: i32, %arg1: i32) -> (i32, i32) {
    %c0_i32 = arith.constant 0 : i32
    return %arg0, %arg1 : i32, i32
  }
  func.func @transform_6(%arg0: i32, %arg1: i32) -> (i32, i32) {
    %c0_i32 = arith.constant 0 : i32
    return %arg0, %arg1 : i32, i32
  }
}

</mosaic_0001>

<llo_original>
// kernel: lif_cell_forward.1
$region0: #{lif_cell_forward.1}
  #allocation0 [shape = 'u32[]', space=smem, size = 0x4, offset = 0x4, fixed_abs, tag = 'smem constant byte address 0x4 - core index']
  #allocation1 [shape = 'u32[144,128]{1,0:T(1,128)}', space=vmem, size = 0x12000, scoped, tag = 'internal scratch']
  %s0 = inlined_call_operand.vmem [shape: bf16[8,128], index: 0, kind: input, shape index: {}]
  %s1 = inlined_call_operand.hbm [shape: bf16[128,128], index: 1, kind: input, shape index: {}]
  %s2 = inlined_call_operand.vmem [shape: f32[1,128], index: 2, kind: input, shape index: {}]
  %s3 = inlined_call_operand.vmem [shape: f32[1,128], index: 3, kind: input, shape index: {}]
  %s4 = inlined_call_operand.vmem [shape: f32[8,128], index: 4, kind: input, shape index: {}, may-alias: {4,6}]
  %s5 = inlined_call_operand.vmem [shape: bf16[8,128], index: 5, kind: output, shape index: {0}]
  %s6 = inlined_call_operand.vmem [shape: f32[8,128], index: 6, kind: output, shape index: {1}, may-alias: {4,6}]
  %7 = xla_tuple %s5, %s6
  %s8 = sld [smem:[#allocation0]]
  $region42: #{lif_cell_forward.1} parent=0
    _
  %s10 = ssub.s32 1, %s8
  %s11 = scalar_select 0, %s10, %s8
  $region1: #{lif_cell_forward.1} parent=0
    #allocation2 [shape = 'u8[32768]{0}', space=vmem, size = 0x8000, scoped, tag = 'input window, operand 1, single buffered']
    #allocation3 [shape = 's32[1]{0}', space=sflag, size = 0x4, scoped, tag = 'scoped memory for lif_cell_forward.1']
    %12 = vsyncpa [#allocation3], 0
    // Predicated region
    $region2: #{lif_cell_forward.1} parent=1 // pred_check
      _
    $region3: #{lif_cell_forward.1} parent=1 // pred_check_branch
      %14 = sbr.rel (0) target = $region5
    $region4: #{lif_cell_forward.1} parent=1 // pred_region
      _
    $region5: #{lif_cell_forward.1} parent=1 // pred_fallthru
      _
    // Predicated region
    $region6: #{lif_cell_forward.1} parent=1 // pred_check
      _
    $region7: #{lif_cell_forward.1} parent=1 // pred_check_branch
      %16 = sbr.rel (0) target = $region9
    $region8: #{lif_cell_forward.1} parent=1 // pred_region
      %s18 = ssub.s32 1024, 1024
      %19 = vsyncadd [#allocation3], %s18
      %s20 = sshll.u32 [#allocation2], 4
      %s21 = int_to_ptr.vmem [resolvable:$true] %s20
      %26 = dma.hbm_to_vmem [thread:$0]  %s1, 1024, %s21, [#allocation3], 64, 64, 4
    $region9: #{lif_cell_forward.1} parent=1 // pred_fallthru
      _
    // Predicated region
    $region10: #{lif_cell_forward.1} parent=1 // pred_check
      _
    $region11: #{lif_cell_forward.1} parent=1 // pred_check_branch
      %28 = sbr.rel (0) target = $region13
    $region12: #{lif_cell_forward.1} parent=1 // pred_region
      _
    $region13: #{lif_cell_forward.1} parent=1 // pred_fallthru
      _
    // Predicated region
    $region14: #{lif_cell_forward.1} parent=1 // pred_check
      _
    $region15: #{lif_cell_forward.1} parent=1 // pred_check_branch
      %30 = sbr.rel (0) target = $region17
    $region16: #{lif_cell_forward.1} parent=1 // pred_region
      _
    $region17: #{lif_cell_forward.1} parent=1 // pred_fallthru
      _
    // Predicated region
    $region18: #{lif_cell_forward.1} parent=1 // pred_check
      _
    $region19: #{lif_cell_forward.1} parent=1 // pred_check_branch
      %32 = sbr.rel (0) target = $region21
    $region20: #{lif_cell_forward.1} parent=1 // pred_region
      _
    $region21: #{lif_cell_forward.1} parent=1 // pred_fallthru
      _
    // Predicated region
    $region22: #{lif_cell_forward.1} parent=1 // pred_check
      _
    $region23: #{lif_cell_forward.1} parent=1 // pred_check_branch
      %34 = sbr.rel (0) target = $region25
    $region24: #{lif_cell_forward.1} parent=1 // pred_region
      %35 = dma.done [#allocation3], 1024
    $region25: #{lif_cell_forward.1} parent=1 // pred_fallthru
      _
    %v37 = vld [vmem:[%s0] sm:$0xf]
    %v38 = vld [vmem:[#allocation2] sm:$0xf]
    %v39 = vld [vmem:[#allocation2 + $0x4] sm:$0xf]
    %v40 = vld [vmem:[#allocation2 + $0x8] sm:$0xf]
    %v41 = vld [vmem:[#allocation2 + $0xc] sm:$0xf]
    %v42 = vld [vmem:[#allocation2 + $0x10] sm:$0xf]
    %v43 = vld [vmem:[#allocation2 + $0x14] sm:$0xf]
    %v44 = vld [vmem:[#allocation2 + $0x18] sm:$0xf]
    %v45 = vld [vmem:[#allocation2 + $0x1c] sm:$0xf]
    %v46 = vld [vmem:[#allocation2 + $0x20] sm:$0xf]
    %v47 = vld [vmem:[#allocation2 + $0x24] sm:$0xf]
    %v48 = vld [vmem:[#allocation2 + $0x28] sm:$0xf]
    %v49 = vld [vmem:[#allocation2 + $0x2c] sm:$0xf]
    %v50 = vld [vmem:[#allocation2 + $0x30] sm:$0xf]
    %v51 = vld [vmem:[#allocation2 + $0x34] sm:$0xf]
    %v52 = vld [vmem:[#allocation2 + $0x38] sm:$0xf]
    %v53 = vld [vmem:[#allocation2 + $0x3c] sm:$0xf]
    %v70 = vunpack.c.l.b16 %v38
    %v71 = vunpack.c.l.b16 %v39
    %v72 = vunpack.c.l.b16 %v40
    %v73 = vunpack.c.l.b16 %v41
    %v74 = vunpack.c.l.b16 %v42
    %v75 = vunpack.c.l.b16 %v43
    %v76 = vunpack.c.l.b16 %v44
    %v77 = vunpack.c.l.b16 %v45
    %v78 = vunpack.c.l.b16 %v46
    %v79 = vunpack.c.l.b16 %v47
    %v80 = vunpack.c.l.b16 %v48
    %v81 = vunpack.c.l.b16 %v49
    %v82 = vunpack.c.l.b16 %v50
    %v83 = vunpack.c.l.b16 %v51
    %v84 = vunpack.c.l.b16 %v52
    %v85 = vunpack.c.l.b16 %v53
    %v86 = vpack.c.b16 %v71, %v70
    %v87 = vpack.c.b16 %v73, %v72
    %v88 = vpack.c.b16 %v75, %v74
    %v89 = vpack.c.b16 %v77, %v76
    %v90 = vpack.c.b16 %v79, %v78
    %v91 = vpack.c.b16 %v81, %v80
    %v92 = vpack.c.b16 %v83, %v82
    %v93 = vpack.c.b16 %v85, %v84
    %102 = vmatprep.subr.bf16.mxu0 0
    %103 = vmatpush1.bf16.msra.mxu0 %v86
    %104 = vmatprep.subr.bf16.mxu0 0
    %105 = vmatpush1.bf16.msra.mxu0 %v87
    %106 = vmatprep.subr.bf16.mxu0 0
    %107 = vmatpush1.bf16.msra.mxu0 %v88
    %108 = vmatprep.subr.bf16.mxu0 0
    %109 = vmatpush1.bf16.msra.mxu0 %v89
    %110 = vmatprep.subr.bf16.mxu0 0
    %111 = vmatpush1.bf16.msra.mxu0 %v90
    %112 = vmatprep.subr.bf16.mxu0 0
    %113 = vmatpush1.bf16.msra.mxu0 %v91
    %114 = vmatprep.subr.bf16.mxu0 0
    %115 = vmatpush1.bf16.msra.mxu0 %v92
    %116 = vmatprep.subr.bf16.mxu0 0
    %117 = vmatpush1.bf16.msra.mxu0 %v93
    %118 = vmatprep.subr.bf16.mxu0 0
    %119 = vmatpush1.bf16.msra.mxu0 0
    %120 = vmatprep.subr.bf16.mxu0 0
    %121 = vmatpush1.bf16.msra.mxu0 0
    %122 = vmatprep.subr.bf16.mxu0 0
    %123 = vmatpush1.bf16.msra.mxu0 0
    %124 = vmatprep.subr.bf16.mxu0 0
    %125 = vmatpush1.bf16.msra.mxu0 0
    %126 = vmatprep.subr.bf16.mxu0 0
    %127 = vmatpush1.bf16.msra.mxu0 0
    %128 = vmatprep.subr.bf16.mxu0 0
    %129 = vmatpush1.bf16.msra.mxu0 0
    %130 = vmatprep.subr.bf16.mxu0 0
    %131 = vmatpush1.bf16.msra.mxu0 0
    %132 = vmatprep.subr.bf16.mxu0 0
    %133 = vmatpush1.bf16.msra.mxu0 0
    %134 = vmatprep.mubr.bf16.mxu0 0
    %135 = vmatmul.mubr.bf16.gmra.mrb[0].mxu0 %v37
    %v136 = vpop.f32.mrb[0].mxu0
    %v137 = vadd.f32 0.0, %v136
    %v138 = vpop.f32.mrb[0].mxu0
    %v139 = vpop.f32.mrb[0].mxu0
    %v140 = vpop.f32.mrb[0].mxu0
    %141 = vdwg.mxu0
    %v142 = vld [vmem:[%s4] sm:$0xff]
    %v143 = vld [vmem:[%s2] sm:$0x1]
    %v145 = vlaneseq
    %v146 = vshrl.u32 %v145, 7
    %v147 = vsub.s32 0, %v146
    %v148 = vrot.slane %v143, %v147
    %v150 = vmul.f32 %v142, %v148
    %v151 = vld [vmem:[%s3] sm:$0x1]
    %v153 = vlaneseq
    %v154 = vshrl.u32 %v153, 7
    %v155 = vsub.s32 0, %v154
    %v156 = vrot.slane %v151, %v155
    %v158 = vmul.f32 %v137, %v156
    %v159 = vadd.f32 %v150, %v158
    %v160 = vsub.f32 %v159, 1.0
    %vm161 = vcmp.gt.f32.partialorder %v160, 0.0
    %v162 = vsel %vm161, 1, 0
    %v163 = vcvt.s32.f32 %v162
    %v164 = vsub.f32 %v159, %v163
    %165 = vst [vmem:[%s6] sm:$0xff] %v164
    %v166 = vpack.c.bf16 %v163, %v163
    %167 = vst [vmem:[%s5] sm:$0xf] %v166
    // Predicated region
    $region26: #{lif_cell_forward.1} parent=1 // pred_check
      _
    $region27: #{lif_cell_forward.1} parent=1 // pred_check_branch
      %169 = sbr.rel (0) target = $region29
    $region28: #{lif_cell_forward.1} parent=1 // pred_region
      _
    $region29: #{lif_cell_forward.1} parent=1 // pred_fallthru
      _
    // Predicated region
    $region30: #{lif_cell_forward.1} parent=1 // pred_check
      _
    $region31: #{lif_cell_forward.1} parent=1 // pred_check_branch
      %171 = sbr.rel (0) target = $region33
    $region32: #{lif_cell_forward.1} parent=1 // pred_region
      _
    $region33: #{lif_cell_forward.1} parent=1 // pred_fallthru
      _
    // Predicated region
    $region34: #{lif_cell_forward.1} parent=1 // pred_check
      _
    $region35: #{lif_cell_forward.1} parent=1 // pred_check_branch
      %173 = sbr.rel (0) target = $region37
    $region36: #{lif_cell_forward.1} parent=1 // pred_region
      _
    $region37: #{lif_cell_forward.1} parent=1 // pred_fallthru
      _
    // Predicated region
    $region38: #{lif_cell_forward.1} parent=1 // pred_check
      _
    $region39: #{lif_cell_forward.1} parent=1 // pred_check_branch
      %175 = sbr.rel (0) target = $region41
    $region40: #{lif_cell_forward.1} parent=1 // pred_region
      _
    $region41: #{lif_cell_forward.1} parent=1 // pred_fallthru
      _
    %176 = vsyncpa [#allocation3], 1

</llo_original>
